<compile_context>
chip_gen: v6e
topology: v6e:2x2x1
jax: 0.10.0
libtpu: 0.0.40
codegen_flags: <defaults>
</compile_context>

<pallas_src>
import functools

import jax
import jax.numpy as jnp
from jax import lax
from jax.experimental import pallas as pl
from jax.experimental.pallas import tpu as pltpu


def _round_up(x, m):
    return ((x + m - 1) // m) * m


def _choose_tiling(B, F, D, *, target_tile_bytes=4 << 20, max_strip=2048,
                   vreg_budget_bytes=192 * 1024, max_tile_lanes=32768):
    """Pick (lane strip, batch tile, n_tiles, padded batch)."""
    B128 = _round_up(B, 128)
    # Lane strip: keep acc_s (D,strip) + loaded slab (D,strip) + acc_sq (1,strip)
    # within ~48 vregs so the field loop never spills.
    strip = (vreg_budget_bytes // ((2 * D + 2) * 4)) // 128 * 128
    strip = int(max(128, min(strip, max_strip, B128)))
    # Batch tile: ~target_tile_bytes of emb per tile (double-buffered by the
    # BlockSpec pipeline), strip-aligned.
    tb_max = (target_tile_bytes // (F * D * 4)) // strip * strip
    tb_max = int(max(strip, min(tb_max, max_tile_lanes)))
    n_tiles = -(-B128 // tb_max)
    # v7x has 2 TensorCores: make sure the "parallel" grid axis has >=2 steps
    # whenever the batch is big enough to split.
    if n_tiles == 1 and B128 >= 2 * strip:
        n_tiles = 2
    tb = _round_up(-(-B128 // n_tiles), strip)   # balanced tiles, waste < strip
    B_pad = n_tiles * tb
    return strip, tb, n_tiles, B_pad


def _fm_kernel(lr_w_ref, emb_ref, bias_ref, out_ref, *, strip, f_unroll):
    # lr_w_ref : (F, tb)     batch on lanes
    # emb_ref  : (F, D, tb)  batch on lanes
    # bias_ref : (1,)        SMEM scalar
    # out_ref  : (1, tb)     lane-dense output
    F, D, tb = emb_ref.shape
    n_strips = tb // strip
    bias = bias_ref[0]

    def strip_body(s, carry):
        s0 = pl.multiple_of(s * strip, strip)

        def field_body(f, acc):
            acc_s, acc_sq = acc
            e = emb_ref[f, :, pl.ds(s0, strip)]                       # (D, strip)
            acc_s = acc_s + e
            # Reduce e*e over D right away (sublane reduce -> XLU slot), keeping
            # the live accumulator footprint at ~(D+1)*strip floats.
            acc_sq = acc_sq + jnp.sum(e * e, axis=0, keepdims=True)   # (1, strip)
            return acc_s, acc_sq

        acc_s, acc_sq = lax.fori_loop(
            0, F, field_body,
            (jnp.zeros((D, strip), jnp.float32),
             jnp.zeros((1, strip), jnp.float32)),
            unroll=f_unroll)

        # FM bi-interaction: 0.5 * ((sum_f e)^2 - sum_f e^2), summed over D.
        bi = 0.5 * (jnp.sum(acc_s * acc_s, axis=0, keepdims=True) - acc_sq)
        # LR part: sum of per-field dim-1 embeddings + bias.
        lr = jnp.sum(lr_w_ref[:, pl.ds(s0, strip)], axis=0, keepdims=True) + bias
        # final_activation is None in this config.
        out_ref[:, pl.ds(s0, strip)] = bi + lr
        return carry

    lax.fori_loop(0, n_strips, strip_body, 0, unroll=False)


def fm_layer_batch_minor(lr_t, emb_t, bias, *, target_tile_bytes=4 << 20,
                         max_strip=2048):
    """Hot path. lr_t: (F, B) f32, emb_t: (F, D, B) f32, bias: (1,) f32.
    Returns (B, 1) f32."""
    F, D, B = emb_t.shape
    assert lr_t.shape == (F, B)

    strip, tb, n_tiles, B_pad = _choose_tiling(
        B, F, D, target_tile_bytes=target_tile_bytes, max_strip=max_strip)

    if B_pad != B:
        emb_t = jnp.pad(emb_t, ((0, 0), (0, 0), (0, B_pad - B)))
        lr_t = jnp.pad(lr_t, ((0, 0), (0, B_pad - B)))

    # VMEM budget: double-buffered emb + lr tiles + output tile, with headroom,
    # capped at 48 MiB so it also fits v7x's 64 MiB physical VMEM.
    vmem_need = 2 * (F * D * tb + F * tb + tb) * 4 + (2 << 20)
    vmem_limit = int(min(max(vmem_need, 32 << 20), 48 << 20))

    cost = pl.CostEstimate(
        flops=B_pad * (3 * F * D + 2 * D + F + 2),
        transcendentals=0,
        bytes_accessed=B_pad * (F * D + F + 1) * 4,
    )

    kernel = functools.partial(_fm_kernel, strip=strip, f_unroll=min(F, 8))

    out = pl.pallas_call(
        kernel,
        out_shape=jax.ShapeDtypeStruct((1, B_pad), jnp.float32),
        grid_spec=pltpu.PrefetchScalarGridSpec(
            num_scalar_prefetch=0,
            grid=(n_tiles,),
            in_specs=[
                pl.BlockSpec((F, tb), lambda i: (0, i)),
                pl.BlockSpec((F, D, tb), lambda i: (0, 0, i)),
                pl.BlockSpec(memory_space=pltpu.MemorySpace.SMEM),
            ],
            out_specs=pl.BlockSpec((1, tb), lambda i: (0, i)),
        ),
        compiler_params=pltpu.CompilerParams(
            dimension_semantics=("parallel",),
            vmem_limit_bytes=vmem_limit,
        ),
        cost_estimate=cost,
    )(lr_t, emb_t, bias)

    return out[0, :B].reshape(B, 1)


def fm_layer(lr_weights_per_field, feature_emb, bias, **kw):
    """Convenience wrapper matching the module's (B, F) / (B, F, D) layout.
    Returns (B, 1) f32."""
    # TODO(synk): this transpose is a full extra HBM pass; the upstream embedding
    # lookup should emit batch-minor (F, D, B) / (F, B) directly and call
    # fm_layer_batch_minor (as the demo below does), fusing layout into the producer.
    emb_t = jnp.transpose(feature_emb, (1, 2, 0))
    lr_t = jnp.transpose(lr_weights_per_field)
    return fm_layer_batch_minor(lr_t, emb_t, bias, **kw)


def reference_fm_layer(lr_weights_per_field, feature_emb, bias):
    lr_out = jnp.sum(lr_weights_per_field, axis=1, keepdims=True) + bias[0]
    sum_emb = jnp.sum(feature_emb, axis=1)
    sum_sq = jnp.sum(feature_emb ** 2, axis=1)
    dot_sum = jnp.sum(0.5 * (sum_emb ** 2 - sum_sq), axis=-1, keepdims=True)
    return dot_sum + lr_out


if __name__ == "__main__":

    def run_case(key, batch, num_fields, emb_dim, vocab_size, check_bfd=False, **kw):
        k_x, k_emb, k_tbl = jax.random.split(key, 3)
        # X: integer feature ids per field (input of LR_Layer's embedding lookup).
        X = jax.random.randint(k_x, (batch, num_fields), 0, vocab_size, dtype=jnp.int32)
        # feature_emb: already-embedded features (second forward arg of FM_Layer).
        feature_emb = jax.random.normal(
            k_emb, (batch, num_fields, emb_dim), dtype=jnp.float32)
        # Per-field LR embedding tables (embedding dim 1); bias = torch.zeros(1).
        lr_table = 0.01 * jax.random.normal(
            k_tbl, (num_fields, vocab_size), dtype=jnp.float32)
        bias = jnp.zeros((1,), dtype=jnp.float32)

        # Data-dependent LR embedding gather (JAX glue), emitted batch-minor (F, B).
        lr_t = jax.vmap(lambda tbl_f, ids_f: tbl_f[ids_f])(lr_table, X.T)
        # Producer-side batch-minor layout (F, D, B): stands in for an upstream
        # embedding kernel that writes batch-minor, so no transpose in the hot path.
        emb_t = jnp.transpose(feature_emb, (1, 2, 0))

        out = jax.block_until_ready(fm_layer_batch_minor(lr_t, emb_t, bias, **kw))
        ref = reference_fm_layer(lr_t.T, feature_emb, bias)
        assert out.shape == (batch, 1)
        assert jnp.allclose(out, ref, atol=1e-3, rtol=1e-4), (out, ref)

        if check_bfd:  # also exercise the (B, F, D) convenience wrapper
            out2 = jax.block_until_ready(fm_layer(lr_t.T, feature_emb, bias, **kw))
            assert jnp.allclose(out2, ref, atol=1e-3, rtol=1e-4), (out2, ref)

    key = jax.random.PRNGKey(0)
    k1, k2, k3 = jax.random.split(key, 3)

    # Tiny config matching the module (single tile, single strip).
    run_case(k1, batch=8, num_fields=4, emb_dim=8, vocab_size=16, check_bfd=True)
    # Multi-tile grid (small forced tiles -> 8 parallel grid steps + padding path).
    run_case(k2, batch=1000, num_fields=6, emb_dim=16, vocab_size=32,
             target_tile_bytes=64 * 1024, max_strip=128)
    # Multi-strip per tile and >=2 tiles (the v7x two-TensorCore split).
    run_case(k3, batch=1000, num_fields=6, emb_dim=16, vocab_size=32, max_strip=256)

    print("KERNEL_OK")
</pallas_src>

<mosaic_0001>
module attributes {stable_mosaic.version = 11 : i64} {
  func.func @_fm_kernel(%arg0: i32, %arg1: memref<4x128xf32, #tpu.memory_space<vmem>>, %arg2: memref<4x8x128xf32, #tpu.memory_space<vmem>>, %arg3: memref<1xf32, #tpu.memory_space<smem>>, %arg4: memref<1x128xf32, #tpu.memory_space<vmem>>) attributes {dimension_semantics = [#tpu.dimension_semantics<parallel>], iteration_bounds = array<i64: 1>, scalar_prefetch = 0 : i64, scratch_operands = 0 : i64, tpu.core_type = #tpu.core_type<tc>, window_params = [{transform_indices = @transform_0, window_bounds = array<i64: 4, 128>}, {transform_indices = @transform_1, window_bounds = array<i64: 4, 8, 128>}, {transform_indices = @transform_2, window_bounds = array<i64: 1>}, {transform_indices = @transform_3, window_bounds = array<i64: 1, 128>}]} {
    %c0 = arith.constant 0 : index
    %0 = memref.load %arg3[%c0] : memref<1xf32, #tpu.memory_space<smem>>
    %c0_i32 = arith.constant 0 : i32
    %c128_i32 = arith.constant 128 : i32
    %1 = arith.muli %c0_i32, %c128_i32 : i32
    %2 = tpu.assume_multiple %1, 128 : i32
    %cst = arith.constant 0.000000e+00 : f32
    %3 = vector.broadcast %cst : f32 to vector<8x128xf32>
    %cst_0 = arith.constant 0.000000e+00 : f32
    %4 = vector.broadcast %cst_0 : f32 to vector<1x128xf32>
    %c0_i32_1 = arith.constant 0 : i32
    %5 = arith.index_cast %c0_i32_1 : i32 to index
    %c0_2 = arith.constant 0 : index
    %6 = arith.index_cast %2 : i32 to index
    %7 = vector.load %arg2[%5, %c0_2, %6] : memref<4x8x128xf32, #tpu.memory_space<vmem>>, vector<1x8x128xf32>
    %8 = vector.shape_cast %7 : vector<1x8x128xf32> to vector<8x128xf32>
    %9 = arith.addf %3, %8 : vector<8x128xf32>
    %10 = arith.mulf %8, %8 : vector<8x128xf32>
    %cst_3 = arith.constant dense<0.000000e+00> : vector<128xf32>
    %11 = vector.multi_reduction <add>, %10, %cst_3 [0] : vector<8x128xf32> to vector<128xf32>
    %12 = vector.shape_cast %11 : vector<128xf32> to vector<1x128xf32>
    %13 = arith.addf %4, %12 : vector<1x128xf32>
    %c1_i32 = arith.constant 1 : i32
    %14 = arith.index_cast %c1_i32 : i32 to index
    %c0_4 = arith.constant 0 : index
    %15 = arith.index_cast %2 : i32 to index
    %16 = vector.load %arg2[%14, %c0_4, %15] : memref<4x8x128xf32, #tpu.memory_space<vmem>>, vector<1x8x128xf32>
    %17 = vector.shape_cast %16 : vector<1x8x128xf32> to vector<8x128xf32>
    %18 = arith.addf %9, %17 : vector<8x128xf32>
    %19 = arith.mulf %17, %17 : vector<8x128xf32>
    %cst_5 = arith.constant dense<0.000000e+00> : vector<128xf32>
    %20 = vector.multi_reduction <add>, %19, %cst_5 [0] : vector<8x128xf32> to vector<128xf32>
    %21 = vector.shape_cast %20 : vector<128xf32> to vector<1x128xf32>
    %22 = arith.addf %13, %21 : vector<1x128xf32>
    %c2_i32 = arith.constant 2 : i32
    %23 = arith.index_cast %c2_i32 : i32 to index
    %c0_6 = arith.constant 0 : index
    %24 = arith.index_cast %2 : i32 to index
    %25 = vector.load %arg2[%23, %c0_6, %24] : memref<4x8x128xf32, #tpu.memory_space<vmem>>, vector<1x8x128xf32>
    %26 = vector.shape_cast %25 : vector<1x8x128xf32> to vector<8x128xf32>
    %27 = arith.addf %18, %26 : vector<8x128xf32>
    %28 = arith.mulf %26, %26 : vector<8x128xf32>
    %cst_7 = arith.constant dense<0.000000e+00> : vector<128xf32>
    %29 = vector.multi_reduction <add>, %28, %cst_7 [0] : vector<8x128xf32> to vector<128xf32>
    %30 = vector.shape_cast %29 : vector<128xf32> to vector<1x128xf32>
    %31 = arith.addf %22, %30 : vector<1x128xf32>
    %c3_i32 = arith.constant 3 : i32
    %32 = arith.index_cast %c3_i32 : i32 to index
    %c0_8 = arith.constant 0 : index
    %33 = arith.index_cast %2 : i32 to index
    %34 = vector.load %arg2[%32, %c0_8, %33] : memref<4x8x128xf32, #tpu.memory_space<vmem>>, vector<1x8x128xf32>
    %35 = vector.shape_cast %34 : vector<1x8x128xf32> to vector<8x128xf32>
    %36 = arith.addf %27, %35 : vector<8x128xf32>
    %37 = arith.mulf %35, %35 : vector<8x128xf32>
    %cst_9 = arith.constant dense<0.000000e+00> : vector<128xf32>
    %38 = vector.multi_reduction <add>, %37, %cst_9 [0] : vector<8x128xf32> to vector<128xf32>
    %39 = vector.shape_cast %38 : vector<128xf32> to vector<1x128xf32>
    %40 = arith.addf %31, %39 : vector<1x128xf32>
    %c4_i32 = arith.constant 4 : i32
    %41 = arith.mulf %36, %36 : vector<8x128xf32>
    %cst_10 = arith.constant dense<0.000000e+00> : vector<128xf32>
    %42 = vector.multi_reduction <add>, %41, %cst_10 [0] : vector<8x128xf32> to vector<128xf32>
    %43 = vector.shape_cast %42 : vector<128xf32> to vector<1x128xf32>
    %44 = arith.subf %43, %40 : vector<1x128xf32>
    %cst_11 = arith.constant 5.000000e-01 : f32
    %45 = vector.broadcast %cst_11 : f32 to vector<1x128xf32>
    %46 = arith.mulf %45, %44 : vector<1x128xf32>
    %c0_12 = arith.constant 0 : index
    %47 = arith.index_cast %2 : i32 to index
    %48 = vector.load %arg1[%c0_12, %47] : memref<4x128xf32, #tpu.memory_space<vmem>>, vector<4x128xf32>
    %cst_13 = arith.constant dense<0.000000e+00> : vector<128xf32>
    %49 = vector.multi_reduction <add>, %48, %cst_13 [0] : vector<4x128xf32> to vector<128xf32>
    %50 = vector.shape_cast %49 : vector<128xf32> to vector<1x128xf32>
    %51 = vector.broadcast %0 : f32 to vector<1x128xf32>
    %52 = arith.addf %50, %51 : vector<1x128xf32>
    %53 = arith.addf %46, %52 : vector<1x128xf32>
    %c0_14 = arith.constant 0 : index
    %54 = arith.index_cast %2 : i32 to index
    %55 = vector.load %arg4[%c0_14, %54] : memref<1x128xf32, #tpu.memory_space<vmem>>, vector<1x128xf32>
    tpu.vector_store %arg4[%c0_14, %54], %53 {strides = array<i32>} : memref<1x128xf32, #tpu.memory_space<vmem>>, vector<1x128xf32>,
    %c1_i32_15 = arith.constant 1 : i32
    return
  }
  func.func @transform_0(%arg0: i32) -> (i32, i32) {
    %c0_i32 = arith.constant 0 : i32
    %c0_i32_0 = arith.constant 0 : i32
    return %c0_i32, %arg0 : i32, i32
  }
  func.func @transform_1(%arg0: i32) -> (i32, i32, i32) {
    %c0_i32 = arith.constant 0 : i32
    %c0_i32_0 = arith.constant 0 : i32
    %c0_i32_1 = arith.constant 0 : i32
    return %c0_i32, %c0_i32_0, %arg0 : i32, i32, i32
  }
  func.func @transform_2(%arg0: i32) -> i32 {
    %c0_i32 = arith.constant 0 : i32
    %c0_i32_0 = arith.constant 0 : i32
    return %c0_i32 : i32
  }
  func.func @transform_3(%arg0: i32) -> (i32, i32) {
    %c0_i32 = arith.constant 0 : i32
    %c0_i32_0 = arith.constant 0 : i32
    return %c0_i32, %arg0 : i32, i32
  }
}

</mosaic_0001>

<llo_original>
// kernel: tpu_custom_call.1
$region0: #{tpu_custom_call.1}
  #allocation0 [shape = 'u32[]', space=smem, size = 0x4, offset = 0x4, fixed_abs, tag = 'smem constant byte address 0x4 - core index']
  #allocation1 [shape = 'u32[144,128]{1,0:T(1,128)}', space=vmem, size = 0x12000, scoped, tag = 'internal scratch']
  #allocation2 [shape = 'f32[1]{0:T(128)S(6)}', space=smem, size = 0x200, scoped, tag = 'scoped memory for tpu_custom_call.1']
  %s0 = inlined_call_operand.hbm [shape: f32[4,128], index: 0, kind: input, shape index: {}]
  %s1 = inlined_call_operand.hbm [shape: f32[4,8,128], index: 1, kind: input, shape index: {}]
  %s2 = inlined_call_operand.<no memory space> [shape: f32[1], index: 2, kind: input, shape index: {}]
  %s3 = inlined_call_operand.hbm [shape: f32[1,128], index: 3, kind: output, shape index: {}]
  %s4 = sld [smem:[#allocation0]]
  $region30: #{tpu_custom_call.1} parent=0
    _
  %s6 = ssub.s32 1, %s4
  %s7 = scalar_select 0, %s6, %s4
  %8 = sst [smem:[#allocation2]] %s2
  $region1: #{tpu_custom_call.1} parent=0
    #allocation3 [shape = 'u8[2048]{0}', space=vmem, size = 0x800, scoped, tag = 'input window, operand 0, single buffered']
    #allocation4 [shape = 's32[1]{0}', space=sflag, size = 0x4, scoped, tag = 'scoped memory for tpu_custom_call.1']
    #allocation5 [shape = 's32[1]{0}', space=sflag, size = 0x4, scoped, tag = 'scoped memory for tpu_custom_call.1']
    #allocation6 [shape = 'u8[16384]{0}', space=vmem, size = 0x4000, scoped, tag = 'input window, operand 1, single buffered']
    #allocation7 [shape = 's32[1]{0}', space=sflag, size = 0x4, scoped, tag = 'scoped memory for tpu_custom_call.1']
    #allocation8 [shape = 'u8[512]{0}', space=vmem, size = 0x400, scoped, tag = 'output window, operand 0, single buffered']
    %9 = vsyncpa [#allocation4], 0
    %10 = vsyncpa [#allocation7], 0
    %11 = vsyncpa [#allocation5], 0
    // Predicated region
    $region2: #{tpu_custom_call.1} parent=1 // pred_check
      _
    $region3: #{tpu_custom_call.1} parent=1 // pred_check_branch
      %13 = sbr.rel (0) target = $region5
    $region4: #{tpu_custom_call.1} parent=1 // pred_region
      %s15 = ssub.s32 64, 64
      %16 = vsyncadd [#allocation4], %s15
      %s18 = sshll.u32 [#allocation3], 4
      %s19 = int_to_ptr.vmem [resolvable:$true] %s18
      %21 = dma.hbm_to_vmem [thread:$0]  %s0, 64, %s19, [#allocation4]
    $region5: #{tpu_custom_call.1} parent=1 // pred_fallthru
      _
    // Predicated region
    $region6: #{tpu_custom_call.1} parent=1 // pred_check
      _
    $region7: #{tpu_custom_call.1} parent=1 // pred_check_branch
      %23 = sbr.rel (0) target = $region9
    $region8: #{tpu_custom_call.1} parent=1 // pred_region
      %s25 = ssub.s32 512, 512
      %26 = vsyncadd [#allocation7], %s25
      %s27 = sshll.u32 [#allocation6], 4
      %s28 = int_to_ptr.vmem [resolvable:$true] %s27
      %33 = dma.hbm_to_vmem [thread:$0]  %s1, 512, %s28, [#allocation7], 128, 128, 8
    $region9: #{tpu_custom_call.1} parent=1 // pred_fallthru
      _
    // Predicated region
    $region10: #{tpu_custom_call.1} parent=1 // pred_check
      _
    $region11: #{tpu_custom_call.1} parent=1 // pred_check_branch
      %35 = sbr.rel (0) target = $region13
    $region12: #{tpu_custom_call.1} parent=1 // pred_region
      _
    $region13: #{tpu_custom_call.1} parent=1 // pred_fallthru
      _
    // Predicated region
    $region14: #{tpu_custom_call.1} parent=1 // pred_check
      _
    $region15: #{tpu_custom_call.1} parent=1 // pred_check_branch
      %37 = sbr.rel (0) target = $region17
    $region16: #{tpu_custom_call.1} parent=1 // pred_region
      %38 = dma.done [#allocation4], 64
    $region17: #{tpu_custom_call.1} parent=1 // pred_fallthru
      _
    // Predicated region
    $region18: #{tpu_custom_call.1} parent=1 // pred_check
      _
    $region19: #{tpu_custom_call.1} parent=1 // pred_check_branch
      %40 = sbr.rel (0) target = $region21
    $region20: #{tpu_custom_call.1} parent=1 // pred_region
      %41 = dma.done [#allocation7], 512
    $region21: #{tpu_custom_call.1} parent=1 // pred_fallthru
      _
    %s42 = sld [smem:[#allocation2]]
    %v43 = vld [vmem:[#allocation6] sm:$0xff]
    %v44 = vadd.f32 %v43, 0.0
    %v45 = vmul.f32 %v43, %v43
    %v46 = vrot.slane %v45, 4
    %v47 = vadd.f32 %v45, %v46
    %v48 = vrot.slane %v47, 2
    %v49 = vadd.f32 %v47, %v48
    %v50 = vrot.slane %v49, 1
    %v51 = vadd.f32 %v49, %v50
    %v52 = vadd.f32 %v51, 0.0
    %s53 = sadd.s32 0, 8
    %s54 = scalar_lea.vmem [#allocation6], %s53
    %v55 = vld [vmem:[%s54] sm:$0xff]
    %v56 = vadd.f32 %v44, %v55
    %v57 = vmul.f32 %v55, %v55
    %v58 = vrot.slane %v57, 4
    %v59 = vadd.f32 %v57, %v58
    %v60 = vrot.slane %v59, 2
    %v61 = vadd.f32 %v59, %v60
    %v62 = vrot.slane %v61, 1
    %v63 = vadd.f32 %v61, %v62
    %v64 = vadd.f32 %v52, %v63
    %s65 = sadd.s32 0, 16
    %s66 = scalar_lea.vmem [#allocation6], %s65
    %v67 = vld [vmem:[%s66] sm:$0xff]
    %v68 = vadd.f32 %v56, %v67
    %v69 = vmul.f32 %v67, %v67
    %v70 = vrot.slane %v69, 4
    %v71 = vadd.f32 %v69, %v70
    %v72 = vrot.slane %v71, 2
    %v73 = vadd.f32 %v71, %v72
    %v74 = vrot.slane %v73, 1
    %v75 = vadd.f32 %v73, %v74
    %v76 = vadd.f32 %v64, %v75
    %s77 = sadd.s32 0, 24
    %s78 = scalar_lea.vmem [#allocation6], %s77
    %v79 = vld [vmem:[%s78] sm:$0xff]
    %v80 = vadd.f32 %v68, %v79
    %v81 = vmul.f32 %v79, %v79
    %v82 = vrot.slane %v81, 4
    %v83 = vadd.f32 %v81, %v82
    %v84 = vrot.slane %v83, 2
    %v85 = vadd.f32 %v83, %v84
    %v86 = vrot.slane %v85, 1
    %v87 = vadd.f32 %v85, %v86
    %v88 = vadd.f32 %v76, %v87
    %v89 = vmul.f32 %v80, %v80
    %v90 = vrot.slane %v89, 4
    %v91 = vadd.f32 %v89, %v90
    %v92 = vrot.slane %v91, 2
    %v93 = vadd.f32 %v91, %v92
    %v94 = vrot.slane %v93, 1
    %v95 = vadd.f32 %v93, %v94
    %v96 = vsub.f32 %v95, %v88
    %v97 = vmul.f32 %v96, 0.5
    %v98 = vld [vmem:[#allocation3] sm:$0xf]
    %vm99 = vcmask 1043456
    %v100 = vsel %vm99, %v98, 0.0
    %v101 = vrot.slane %v100, 4
    %v102 = vadd.f32 %v100, %v101
    %v103 = vrot.slane %v102, 2
    %v104 = vadd.f32 %v102, %v103
    %v105 = vrot.slane %v104, 1
    %v106 = vadd.f32 %v104, %v105
    %v107 = vstv %s42
    %v108 = vadd.f32 %v106, %v107
    %v109 = vadd.f32 %v97, %v108
    %110 = vst [vmem:[#allocation8] sm:$0x1] %v109
    // Predicated region
    $region22: #{tpu_custom_call.1} parent=1 // pred_check
      _
    $region23: #{tpu_custom_call.1} parent=1 // pred_check_branch
      %112 = sbr.rel (0) target = $region25
    $region24: #{tpu_custom_call.1} parent=1 // pred_region
      %s114 = ssub.s32 16, 16
      %115 = vsyncadd [#allocation5], %s114
      %s117 = sshll.u32 [#allocation8], 4
      %s118 = int_to_ptr.vmem [resolvable:$true] %s117
      %120 = dma.vmem_to_hbm [thread:$0]  %s118, 16, %s3, [#allocation5]
    $region25: #{tpu_custom_call.1} parent=1 // pred_fallthru
      _
    // Predicated region
    $region26: #{tpu_custom_call.1} parent=1 // pred_check
      _
    $region27: #{tpu_custom_call.1} parent=1 // pred_check_branch
      %122 = sbr.rel (0) target = $region29
    $region28: #{tpu_custom_call.1} parent=1 // pred_region
      %123 = dma.done [#allocation5], 16
    $region29: #{tpu_custom_call.1} parent=1 // pred_fallthru
      _
    %124 = vsyncpa [#allocation4], 1
    %125 = vsyncpa [#allocation7], 1
    %126 = vsyncpa [#allocation5], 1

</llo_original>
